<compile_context>
chip_gen: v7x
topology: tpu7x:2x2x1
jax: 0.10.0
libtpu: 0.0.40
codegen_flags: <defaults>
</compile_context>

<pallas_src>
import functools

import jax
import jax.numpy as jnp
from jax.experimental import pallas as pl
from jax.experimental.pallas import tpu as pltpu


# ---------------------------------------------------------------------------
# Kernels
# ---------------------------------------------------------------------------
def _tc_dnn_hidden_kernel(x_ref, w1_ref, b1_ref, w2_ref, b2_ref, o_ref):
    """num_hidden > 0 path: score = tanh(w2 . tanh(W1 x + b1) + b2)."""
    x = x_ref[...].astype(jnp.float32)   # (TILE_N, D); bf16 inputs upcast here
    w1 = w1_ref[...]                     # (H, D)  PyTorch Linear (out, in)
    b1 = b1_ref[...]                     # (H, 1)
    w2 = w2_ref[...]                     # (H, 1)  ranker weight column
    b2 = b2_ref[0, 0]                    # scalar in SMEM

    # hT = tanh(W1 @ x^T + b1): contract the feature dim of BOTH operands on
    # the MXU -> (H, TILE_N).  Batch lands on lanes, so everything downstream
    # (and the final store) is lane-dense with no relayout.
    ht = jnp.tanh(
        jax.lax.dot_general(
            w1, x, (((1,), (1,)), ((), ())),
            preferred_element_type=jnp.float32) + b1)

    # Ranker (H -> 1) as VPU multiply + sublane (axis 0) reduce instead of a
    # 1-column MXU matmul: uses otherwise-idle VPU/XLU slots.
    s = jnp.sum(ht * w2, axis=0, keepdims=True) + b2           # (1, TILE_N)
    o_ref[...] = jnp.tanh(s).astype(o_ref.dtype)


def _tc_dnn_nohidden_kernel(x_ref, w2_ref, b2_ref, o_ref):
    """num_hidden == 0 path: score = tanh(w2 . x + b2)."""
    x = x_ref[...].astype(jnp.float32)   # (TILE_N, D)
    w2 = w2_ref[...]                     # (1, D)  PyTorch ranker weight layout
    b2 = b2_ref[0, 0]

    # s^T = W2 @ x^T: single-row MXU matmul, scores land in (1, TILE_N)
    # lane-major layout directly.
    s = jax.lax.dot_general(
        w2, x, (((1,), (1,)), ((), ())),
        preferred_element_type=jnp.float32)                    # (1, TILE_N)
    o_ref[...] = jnp.tanh(s + b2).astype(o_ref.dtype)


# ---------------------------------------------------------------------------
# Tiling helpers
# ---------------------------------------------------------------------------
def _round_up(x, m):
    return (x + m - 1) // m * m


def _choose_tile_n(n, input_dim, max_tile_n, block_bytes):
    """Pick the batch-tile row count by VMEM bytes, not by a fixed row count.

    Each input block occupies tile_n * max(D, 128) * 4 bytes in VMEM (blocks
    with D < 128 lane-pad to 128), double-buffered by the Pallas pipeline.
    """
    lane_dim = max(input_dim, 128)
    tile = (block_bytes // (4 * lane_dim)) // 128 * 128
    tile = max(128, min(tile, max_tile_n))
    # Keep >= 2 grid steps when there is enough work so both v7x TensorCores
    # get a share (no-op on single-TC v5e/v6e).
    if n > 256:
        tile = min(tile, _round_up(pl.cdiv(n, 2), 128))
    if n <= tile:
        # Single block exactly equal to the array: trivially legal BlockSpec
        # for any N (incl. N < 8), no padding, no masking.
        return n, 1
    return tile, pl.cdiv(n, tile)


# ---------------------------------------------------------------------------
# Per-batch pallas_call wrapper
# ---------------------------------------------------------------------------
def _ranker_scores(x, params, *, num_hidden, max_tile_n, block_bytes):
    n, input_dim = x.shape
    tile_n, num_tiles = _choose_tile_n(n, input_dim, max_tile_n, block_bytes)
    # Output slab is allocated grid-aligned (free) -> every store is a full
    # lane-dense (1, tile_n) block; the ragged tail of the *input* is handled
    # by Pallas's masked edge block (garbage rows flow through tanh but the
    # corresponding output columns are sliced away below).
    n_out = num_tiles * tile_n

    x_spec = pl.BlockSpec((tile_n, input_dim), lambda i: (i, 0))
    out_spec = pl.BlockSpec((1, tile_n), lambda i: (0, i))
    out_shape = jax.ShapeDtypeStruct((1, n_out), jnp.float32)

    def const_vmem_spec(shape):
        # Tiny weights: constant block index keeps them resident across steps.
        return pl.BlockSpec(shape, lambda i: (0, 0))

    smem_scalar_spec = pl.BlockSpec((1, 1), lambda i: (0, 0),
                                    memory_space=pltpu.MemorySpace.SMEM)

    x_bytes = n * input_dim * jnp.dtype(x.dtype).itemsize
    if num_hidden > 0:
        kernel = _tc_dnn_hidden_kernel
        args = (x, params["w1"], params["b1"], params["w2"], params["b2"])
        in_specs = [
            x_spec,
            const_vmem_spec((num_hidden, input_dim)),   # W1 (out, in)
            const_vmem_spec((num_hidden, 1)),           # b1 column
            const_vmem_spec((num_hidden, 1)),           # ranker weight column
            smem_scalar_spec,                           # b2 scalar
        ]
        cost = pl.CostEstimate(
            flops=2 * n * num_hidden * (input_dim + 1),
            transcendentals=n * (num_hidden + 1),
            bytes_accessed=x_bytes
            + 4 * (num_hidden * (input_dim + 2) + 1) + 4 * n_out)
    else:
        kernel = _tc_dnn_nohidden_kernel
        args = (x, params["w2"], params["b2"])
        in_specs = [
            x_spec,
            const_vmem_spec((1, input_dim)),            # ranker weight row
            smem_scalar_spec,                           # b2 scalar
        ]
        cost = pl.CostEstimate(
            flops=2 * n * input_dim,
            transcendentals=n,
            bytes_accessed=x_bytes + 4 * (input_dim + 1) + 4 * n_out)

    scores = pl.pallas_call(
        kernel,
        grid=(num_tiles,),
        in_specs=in_specs,
        out_specs=out_spec,
        out_shape=out_shape,
        compiler_params=pltpu.CompilerParams(
            # Batch tiles are independent -> shard across v7x's 2 TensorCores.
            dimension_semantics=("parallel",),
            # ~2 buffers x <=2.2 MiB input + weights + output << 32 MiB, which
            # is within the scoped-VMEM default on all of v5e/v6e/v7x.
            vmem_limit_bytes=32 * 1024 * 1024,
        ),
        cost_estimate=cost,
    )(*args)

    return scores[0, :n].reshape(n, 1)


@functools.partial(
    jax.jit, static_argnames=("num_hidden", "max_tile_n", "block_bytes"))
def simple_tc_model_dnn_forward(d_tre, d_unt, params, *, num_hidden,
                                max_tile_n=8192, block_bytes=2 << 20):
    """Pallas implementation of SimpleTCModelDNN.forward.

    Args:
      d_tre: (N_tre, input_dim) treatment features (f32 or bf16).
      d_unt: (N_unt, input_dim) control features (f32 or bf16).
      params: dict of weights in PyTorch-native layouts (see init_params).
      num_hidden: static int, number of hidden units (0 => no hidden layer).
      max_tile_n: static int, hard cap on the batch tile (multiple of 128).
      block_bytes: static int, VMEM byte budget per (lane-padded) input block.

    Returns:
      (h_tre_rnkscore, h_unt_rnkscore), each of shape (N, 1) float32.
    """
    score = functools.partial(
        _ranker_scores, params=params, num_hidden=num_hidden,
        max_tile_n=max_tile_n, block_bytes=block_bytes)
    # Two independent pallas_calls (no concatenate/pad HBM pass); the tiny
    # weights being DMA'd twice is negligible next to the feature traffic.
    return score(d_tre), score(d_unt)


# ---------------------------------------------------------------------------
# Deterministic parameter init (mimics nn.Linear's U(-1/sqrt(fan_in), ...)),
# stored in the layouts the kernel consumes:
#   w1: (H, D)   (PyTorch weight layout)        b1: (H, 1)
#   w2: (H, 1)   if num_hidden > 0 (ranker weight transposed to a column)
#   w2: (1, D)   if num_hidden == 0 (PyTorch ranker weight layout)
#   b2: (1, 1)
# ---------------------------------------------------------------------------
def init_params(key, input_dim, num_hidden):
    params = {}
    if num_hidden > 0:
        k1, k2, k3, k4 = jax.random.split(key, 4)
        bound1 = 1.0 / jnp.sqrt(jnp.float32(input_dim))
        params["w1"] = jax.random.uniform(
            k1, (num_hidden, input_dim), jnp.float32, -bound1, bound1)
        params["b1"] = jax.random.uniform(
            k2, (num_hidden, 1), jnp.float32, -bound1, bound1)
        bound2 = 1.0 / jnp.sqrt(jnp.float32(num_hidden))
        params["w2"] = jax.random.uniform(
            k3, (num_hidden, 1), jnp.float32, -bound2, bound2)
        params["b2"] = jax.random.uniform(
            k4, (1, 1), jnp.float32, -bound2, bound2)
    else:
        k3, k4 = jax.random.split(key, 2)
        bound = 1.0 / jnp.sqrt(jnp.float32(input_dim))
        params["w2"] = jax.random.uniform(
            k3, (1, input_dim), jnp.float32, -bound, bound)
        params["b2"] = jax.random.uniform(
            k4, (1, 1), jnp.float32, -bound, bound)
    return params


def _reference_forward(d_tre, d_unt, params, num_hidden):
    """Pure-JAX reference mirroring the PyTorch module (f32-accurate dots)."""
    hp = jax.lax.Precision.HIGHEST

    def score(x):
        x = x.astype(jnp.float32)
        if num_hidden > 0:
            h = jnp.tanh(jnp.dot(x, params["w1"].T, precision=hp)
                         + params["b1"][:, 0])
            return jnp.tanh(jnp.dot(h, params["w2"], precision=hp)
                            + params["b2"][0, 0])
        return jnp.tanh(jnp.dot(x, params["w2"].T, precision=hp)
                        + params["b2"][0, 0])

    return score(d_tre), score(d_unt)


# ---------------------------------------------------------------------------
# Demo / self-test (small shapes)
# ---------------------------------------------------------------------------
if __name__ == "__main__":
    key = jax.random.PRNGKey(0)
    k_tre, k_unt, k_param, k_tre2, k_unt2 = jax.random.split(key, 5)

    # Tolerance note: the in-kernel MXU dot uses default precision; if the
    # lowering uses bf16 passes for f32 operands the error vs. the f32
    # reference can reach ~1e-3, so the check uses a conservative 1e-2.
    ATOL = RTOL = 1e-2

    # --- Test 1: hidden-layer path, tiny batch (single full-array block). ---
    input_dim, num_hidden = 16, 32
    d_tre = jax.random.normal(k_tre, (8, input_dim), jnp.float32)
    d_unt = jax.random.normal(k_unt, (8, input_dim), jnp.float32)
    params = init_params(k_param, input_dim, num_hidden)

    s_tre, s_unt = simple_tc_model_dnn_forward(
        d_tre, d_unt, params, num_hidden=num_hidden)
    jax.block_until_ready((s_tre, s_unt))
    r_tre, r_unt = _reference_forward(d_tre, d_unt, params, num_hidden)
    assert s_tre.shape == (8, 1) and s_unt.shape == (8, 1)
    assert jnp.allclose(s_tre, r_tre, atol=ATOL, rtol=RTOL)
    assert jnp.allclose(s_unt, r_unt, atol=ATOL, rtol=RTOL)

    # --- Test 2: multi-tile grid with a ragged last block and larger D. ---
    input_dim2 = 64
    d_tre2 = jax.random.normal(k_tre2, (300, input_dim2), jnp.float32)
    d_unt2 = jax.random.normal(k_unt2, (200, input_dim2), jnp.float32)
    params2 = init_params(k_param, input_dim2, num_hidden)
    s_tre2, s_unt2 = simple_tc_model_dnn_forward(
        d_tre2, d_unt2, params2, num_hidden=num_hidden, max_tile_n=128)
    jax.block_until_ready((s_tre2, s_unt2))
    r_tre2, r_unt2 = _reference_forward(d_tre2, d_unt2, params2, num_hidden)
    assert s_tre2.shape == (300, 1) and s_unt2.shape == (200, 1)
    assert jnp.allclose(s_tre2, r_tre2, atol=ATOL, rtol=RTOL)
    assert jnp.allclose(s_unt2, r_unt2, atol=ATOL, rtol=RTOL)

    # --- Test 3: num_hidden == 0 path. ---
    params0 = init_params(k_param, input_dim, 0)
    s_tre0, s_unt0 = simple_tc_model_dnn_forward(
        d_tre, d_unt, params0, num_hidden=0)
    jax.block_until_ready((s_tre0, s_unt0))
    r_tre0, r_unt0 = _reference_forward(d_tre, d_unt, params0, 0)
    assert jnp.allclose(s_tre0, r_tre0, atol=ATOL, rtol=RTOL)
    assert jnp.allclose(s_unt0, r_unt0, atol=ATOL, rtol=RTOL)

    # --- Test 4: bf16 feature slab (half the HBM bytes), f32 math inside. ---
    s_treb, s_untb = simple_tc_model_dnn_forward(
        d_tre.astype(jnp.bfloat16), d_unt.astype(jnp.bfloat16), params,
        num_hidden=num_hidden)
    jax.block_until_ready((s_treb, s_untb))
    assert jnp.allclose(s_treb, r_tre, atol=5e-2, rtol=5e-2)
    assert jnp.allclose(s_untb, r_unt, atol=5e-2, rtol=5e-2)

    print("KERNEL_OK")
</pallas_src>

<mosaic_0001>
module attributes {stable_mosaic.version = 11 : i64} {
  func.func @_tc_dnn_hidden_kernel(%arg0: i32, %arg1: memref<8x16xf32, #tpu.memory_space<vmem>>, %arg2: memref<32x16xf32, #tpu.memory_space<vmem>>, %arg3: memref<32x1xf32, #tpu.memory_space<vmem>>, %arg4: memref<32x1xf32, #tpu.memory_space<vmem>>, %arg5: memref<1x1xf32, #tpu.memory_space<smem>>, %arg6: memref<1x8xf32, #tpu.memory_space<vmem>>) attributes {dimension_semantics = [#tpu.dimension_semantics<parallel>], iteration_bounds = array<i64: 1>, scalar_prefetch = 0 : i64, scratch_operands = 0 : i64, tpu.core_type = #tpu.core_type<tc>, window_params = [{transform_indices = @transform_0, window_bounds = array<i64: 8, 16>}, {pipeline_mode = #tpu.pipeline_mode<synchronous>, transform_indices = @transform_1, window_bounds = array<i64: 32, 16>}, {pipeline_mode = #tpu.pipeline_mode<synchronous>, transform_indices = @transform_2, window_bounds = array<i64: 32, 1>}, {pipeline_mode = #tpu.pipeline_mode<synchronous>, transform_indices = @transform_3, window_bounds = array<i64: 32, 1>}, {transform_indices = @transform_4, window_bounds = array<i64: 1, 1>}, {transform_indices = @transform_5, window_bounds = array<i64: 1, 8>}]} {
    %c0 = arith.constant 0 : index
    %c0_0 = arith.constant 0 : index
    %0 = vector.load %arg1[%c0, %c0_0] : memref<8x16xf32, #tpu.memory_space<vmem>>, vector<8x16xf32>
    %c0_1 = arith.constant 0 : index
    %c0_2 = arith.constant 0 : index
    %1 = vector.load %arg2[%c0_1, %c0_2] : memref<32x16xf32, #tpu.memory_space<vmem>>, vector<32x16xf32>
    %c0_3 = arith.constant 0 : index
    %c0_4 = arith.constant 0 : index
    %2 = vector.load %arg3[%c0_3, %c0_4] : memref<32x1xf32, #tpu.memory_space<vmem>>, vector<32x1xf32>
    %c0_5 = arith.constant 0 : index
    %c0_6 = arith.constant 0 : index
    %3 = vector.load %arg4[%c0_5, %c0_6] : memref<32x1xf32, #tpu.memory_space<vmem>>, vector<32x1xf32>
    %c0_7 = arith.constant 0 : index
    %c0_8 = arith.constant 0 : index
    %4 = memref.load %arg5[%c0_7, %c0_8] : memref<1x1xf32, #tpu.memory_space<smem>>
    %cst = arith.constant dense<0.000000e+00> : vector<32x8xf32>
    %5 = tpu.matmul %1, %0, %cst {dimension_numbers = #tpu.dot_dimension_numbers<[1], [1], [0], [0], [0, 0, 1, 0], [], []>} : vector<32x16xf32>, vector<8x16xf32>, vector<32x8xf32> -> vector<32x8xf32>
    %6 = vector.broadcast %2 : vector<32x1xf32> to vector<32x8xf32>
    %7 = arith.addf %5, %6 : vector<32x8xf32>
    %8 = math.tanh %7 : vector<32x8xf32>
    %9 = vector.broadcast %3 : vector<32x1xf32> to vector<32x8xf32>
    %10 = arith.mulf %8, %9 : vector<32x8xf32>
    %cst_9 = arith.constant dense<0.000000e+00> : vector<8xf32>
    %11 = vector.multi_reduction <add>, %10, %cst_9 [0] : vector<32x8xf32> to vector<8xf32>
    %12 = vector.shape_cast %11 : vector<8xf32> to vector<1x8xf32>
    %13 = vector.broadcast %4 : f32 to vector<1x8xf32>
    %14 = arith.addf %12, %13 : vector<1x8xf32>
    %15 = math.tanh %14 : vector<1x8xf32>
    %c0_10 = arith.constant 0 : index
    %c0_11 = arith.constant 0 : index
    %16 = vector.load %arg6[%c0_10, %c0_11] : memref<1x8xf32, #tpu.memory_space<vmem>>, vector<1x8xf32>
    tpu.vector_store %arg6[%c0_10, %c0_11], %15 {strides = array<i32>} : memref<1x8xf32, #tpu.memory_space<vmem>>, vector<1x8xf32>,
    return
  }
  func.func @transform_0(%arg0: i32) -> (i32, i32) {
    %c0_i32 = arith.constant 0 : i32
    %c0_i32_0 = arith.constant 0 : i32
    return %arg0, %c0_i32 : i32, i32
  }
  func.func @transform_1(%arg0: i32) -> (i32, i32) {
    %c0_i32 = arith.constant 0 : i32
    %c0_i32_0 = arith.constant 0 : i32
    %c0_i32_1 = arith.constant 0 : i32
    return %c0_i32, %c0_i32_0 : i32, i32
  }
  func.func @transform_2(%arg0: i32) -> (i32, i32) {
    %c0_i32 = arith.constant 0 : i32
    %c0_i32_0 = arith.constant 0 : i32
    %c0_i32_1 = arith.constant 0 : i32
    return %c0_i32, %c0_i32_0 : i32, i32
  }
  func.func @transform_3(%arg0: i32) -> (i32, i32) {
    %c0_i32 = arith.constant 0 : i32
    %c0_i32_0 = arith.constant 0 : i32
    %c0_i32_1 = arith.constant 0 : i32
    return %c0_i32, %c0_i32_0 : i32, i32
  }
  func.func @transform_4(%arg0: i32) -> (i32, i32) {
    %c0_i32 = arith.constant 0 : i32
    %c0_i32_0 = arith.constant 0 : i32
    %c0_i32_1 = arith.constant 0 : i32
    return %c0_i32, %c0_i32_0 : i32, i32
  }
  func.func @transform_5(%arg0: i32) -> (i32, i32) {
    %c0_i32 = arith.constant 0 : i32
    %c0_i32_0 = arith.constant 0 : i32
    return %c0_i32, %arg0 : i32, i32
  }
}

</mosaic_0001>

<llo_original>
// kernel: simple_tc_model_dnn_forward.3
$region0: #{simple_tc_model_dnn_forward.3}
  #allocation0 [shape = 'u32[]', space=smem, size = 0x4, offset = 0x4, fixed_abs, tag = 'smem constant byte address 0x4 - core index']
  #allocation1 [shape = 'u32[144,128]{1,0:T(1,128)}', space=vmem, size = 0x12000, scoped, tag = 'internal scratch']
  #allocation2 [shape = 'f32[1,1]{1,0:T(1,128)S(6)}', space=smem, size = 0x200, scoped, tag = 'scoped memory for simple_tc_model_dnn_forward.3']
  %s0 = inlined_call_operand.vmem [shape: f32[8,16], index: 0, kind: input, shape index: {}]
  %s1 = inlined_call_operand.vmem [shape: f32[32,16], index: 1, kind: input, shape index: {}]
  %s2 = inlined_call_operand.vmem [shape: f32[32,1], index: 2, kind: input, shape index: {}]
  %s3 = inlined_call_operand.vmem [shape: f32[32,1], index: 3, kind: input, shape index: {}]
  %s4 = inlined_call_operand.<no memory space> [shape: f32[1,1], index: 4, kind: input, shape index: {}]
  %s5 = inlined_call_operand.hbm [shape: f32[1,8], index: 5, kind: output, shape index: {}]
  %s6 = sld [smem:[#allocation0]]
  $region30: #{simple_tc_model_dnn_forward.3} parent=0
    _
  %s8 = ssub.s32 1, %s6
  %s9 = scalar_select 0, %s8, %s6
  %10 = sst [smem:[#allocation2]] %s4
  $region1: #{simple_tc_model_dnn_forward.3} parent=0
    #allocation3 [shape = 'u8[512]{0}', space=vmem, size = 0x400, scoped, tag = 'output window, operand 0, single buffered']
    #allocation4 [shape = 's32[1]{0}', space=sflag, size = 0x4, scoped, tag = 'scoped memory for simple_tc_model_dnn_forward.3']
    %11 = vsyncpa [#allocation4], 0
    // Predicated region
    $region2: #{simple_tc_model_dnn_forward.3} parent=1 // pred_check
      _
    $region3: #{simple_tc_model_dnn_forward.3} parent=1 // pred_check_branch
      %13 = sbr.rel (0) target = $region5
    $region4: #{simple_tc_model_dnn_forward.3} parent=1 // pred_region
      _
    $region5: #{simple_tc_model_dnn_forward.3} parent=1 // pred_fallthru
      _
    // Predicated region
    $region6: #{simple_tc_model_dnn_forward.3} parent=1 // pred_check
      _
    $region7: #{simple_tc_model_dnn_forward.3} parent=1 // pred_check_branch
      %15 = sbr.rel (0) target = $region9
    $region8: #{simple_tc_model_dnn_forward.3} parent=1 // pred_region
      _
    $region9: #{simple_tc_model_dnn_forward.3} parent=1 // pred_fallthru
      _
    // Predicated region
    $region10: #{simple_tc_model_dnn_forward.3} parent=1 // pred_check
      _
    $region11: #{simple_tc_model_dnn_forward.3} parent=1 // pred_check_branch
      %17 = sbr.rel (0) target = $region13
    $region12: #{simple_tc_model_dnn_forward.3} parent=1 // pred_region
      _
    $region13: #{simple_tc_model_dnn_forward.3} parent=1 // pred_fallthru
      _
    // Predicated region
    $region14: #{simple_tc_model_dnn_forward.3} parent=1 // pred_check
      _
    $region15: #{simple_tc_model_dnn_forward.3} parent=1 // pred_check_branch
      %19 = sbr.rel (0) target = $region17
    $region16: #{simple_tc_model_dnn_forward.3} parent=1 // pred_region
      _
    $region17: #{simple_tc_model_dnn_forward.3} parent=1 // pred_fallthru
      _
    // Predicated region
    $region18: #{simple_tc_model_dnn_forward.3} parent=1 // pred_check
      _
    $region19: #{simple_tc_model_dnn_forward.3} parent=1 // pred_check_branch
      %21 = sbr.rel (0) target = $region21
    $region20: #{simple_tc_model_dnn_forward.3} parent=1 // pred_region
      _
    $region21: #{simple_tc_model_dnn_forward.3} parent=1 // pred_fallthru
      _
    %v22 = vld [vmem:[%s0] sm:$0xff]
    %v23 = vld [vmem:[%s1] sm:$0xff]
    %v24 = vld [vmem:[%s1 + $0x8] sm:$0xff]
    %v25 = vld [vmem:[%s1 + $0x10] sm:$0xff]
    %v26 = vld [vmem:[%s1 + $0x18] sm:$0xff]
    %v27 = vld [vmem:[%s2] sm:$0xff]
    %v28 = vld [vmem:[%s2 + $0x8] sm:$0xff]
    %v29 = vld [vmem:[%s2 + $0x10] sm:$0xff]
    %v30 = vld [vmem:[%s2 + $0x18] sm:$0xff]
    %v31 = vld [vmem:[%s3] sm:$0xff]
    %v32 = vld [vmem:[%s3 + $0x8] sm:$0xff]
    %v33 = vld [vmem:[%s3 + $0x10] sm:$0xff]
    %v34 = vld [vmem:[%s3 + $0x18] sm:$0xff]
    %s35 = sld [smem:[#allocation2]]
    %37 = vset.pattern.permute.xlu0 0
    %38 = vperm.xlu0 %37, %v27
    %v39 = vpop.permute.xlu0 %38
    %42 = vset.pattern.permute.xlu0 0
    %43 = vperm.xlu0 %42, %v28
    %v44 = vpop.permute.xlu0 %43
    %47 = vset.pattern.permute.xlu0 0
    %48 = vperm.xlu0 %47, %v29
    %v49 = vpop.permute.xlu0 %48
    %52 = vset.pattern.permute.xlu0 0
    %53 = vperm.xlu0 %52, %v30
    %v54 = vpop.permute.xlu0 %53
    %vm56 = vcmask 130048
    %v58 = vsel %vm56, %v23, 0
    %v61 = vsel %vm56, %v24, 0
    %v64 = vsel %vm56, %v25, 0
    %v67 = vsel %vm56, %v26, 0
    %v70 = vsel %vm56, %v22, 0
    %72 = vmatprep.subr.mxu0 0.0
    %73 = vmatpush1.xpose.msra.mxu0 %v70
    %74 = vmatprep.subr.mxu0 0.0
    %75 = vmatpush1.xpose.msra.mxu0 0.0
    %76 = vmatprep.subr.mxu0 0.0
    %77 = vmatpush1.xpose.msra.mxu0 0.0
    %78 = vmatprep.subr.mxu0 0.0
    %79 = vmatpush1.xpose.msra.mxu0 0.0
    %80 = vmatprep.subr.mxu0 0.0
    %81 = vmatpush1.xpose.msra.mxu0 0.0
    %82 = vmatprep.subr.mxu0 0.0
    %83 = vmatpush1.xpose.msra.mxu0 0.0
    %84 = vmatprep.subr.mxu0 0.0
    %85 = vmatpush1.xpose.msra.mxu0 0.0
    %86 = vmatprep.subr.mxu0 0.0
    %87 = vmatpush1.xpose.msra.mxu0 0.0
    %88 = vmatprep.subr.mxu0 0.0
    %89 = vmatpush1.xpose.msra.mxu0 0.0
    %90 = vmatprep.subr.mxu0 0.0
    %91 = vmatpush1.xpose.msra.mxu0 0.0
    %92 = vmatprep.subr.mxu0 0.0
    %93 = vmatpush1.xpose.msra.mxu0 0.0
    %94 = vmatprep.subr.mxu0 0.0
    %95 = vmatpush1.xpose.msra.mxu0 0.0
    %96 = vmatprep.subr.mxu0 0.0
    %97 = vmatpush1.xpose.msra.mxu0 0.0
    %98 = vmatprep.subr.mxu0 0.0
    %99 = vmatpush1.xpose.msra.mxu0 0.0
    %100 = vmatprep.subr.mxu0 0.0
    %101 = vmatpush1.xpose.msra.mxu0 0.0
    %102 = vmatprep.subr.mxu0 0.0
    %103 = vmatpush1.xpose.msra.mxu0 0.0
    %104 = vmatprep.subr.mxu0 0.0
    %105 = vmatpush1.xpose.msra.mxu0 0.0
    %106 = vmatprep.subr.mxu0 0.0
    %107 = vmatpush1.xpose.msra.mxu0 0.0
    %108 = vmatprep.subr.mxu0 0.0
    %109 = vmatpush1.xpose.msra.mxu0 0.0
    %110 = vmatprep.subr.mxu0 0.0
    %111 = vmatpush1.xpose.msra.mxu0 0.0
    %112 = vmatprep.subr.mxu0 0.0
    %113 = vmatpush1.xpose.msra.mxu0 0.0
    %114 = vmatprep.subr.mxu0 0.0
    %115 = vmatpush1.xpose.msra.mxu0 0.0
    %116 = vmatprep.subr.mxu0 0.0
    %117 = vmatpush1.xpose.msra.mxu0 0.0
    %118 = vmatprep.subr.mxu0 0.0
    %119 = vmatpush1.xpose.msra.mxu0 0.0
    %120 = vmatprep.subr.mxu0 0.0
    %121 = vmatpush1.xpose.msra.mxu0 0.0
    %122 = vmatprep.subr.mxu0 0.0
    %123 = vmatpush1.xpose.msra.mxu0 0.0
    %124 = vmatprep.subr.mxu0 0.0
    %125 = vmatpush1.xpose.msra.mxu0 0.0
    %126 = vmatprep.subr.mxu0 0.0
    %127 = vmatpush1.xpose.msra.mxu0 0.0
    %128 = vmatprep.subr.mxu0 0.0
    %129 = vmatpush1.xpose.msra.mxu0 0.0
    %130 = vmatprep.subr.mxu0 0.0
    %131 = vmatpush1.xpose.msra.mxu0 0.0
    %132 = vmatprep.subr.mxu0 0.0
    %133 = vmatpush1.xpose.msra.mxu0 0.0
    %134 = vmatprep.subr.mxu0 0.0
    %135 = vmatpush1.xpose.msra.mxu0 0.0
    %136 = vmatprep.mubr.f32.mxu0 0.0
    %137 = vmatmul.mubr.f32.gmra.mrb[0].mxu0 %v58
    %v138 = vpop.f32.mrb[0].mxu0
    %v139 = vadd.f32 %v39, %v138
    %v140 = vpop.f32.mrb[0].mxu0
    %141 = vmatprep.mubr.f32.mxu0 0.0
    %142 = vmatmul.mubr.f32.gmra.mrb[0].mxu0 %v61
    %v143 = vpop.f32.mrb[0].mxu0
    %v144 = vadd.f32 %v44, %v143
    %v145 = vpop.f32.mrb[0].mxu0
    %146 = vmatprep.mubr.f32.mxu0 0.0
    %147 = vmatmul.mubr.f32.gmra.mrb[0].mxu0 %v64
    %v148 = vpop.f32.mrb[0].mxu0
    %v149 = vadd.f32 %v49, %v148
    %v150 = vpop.f32.mrb[0].mxu0
    %151 = vmatprep.mubr.f32.mxu0 0.0
    %152 = vmatmul.mubr.f32.gmra.mrb[0].mxu0 %v67
    %v153 = vpop.f32.mrb[0].mxu0
    %v154 = vadd.f32 %v54, %v153
    %v155 = vpop.f32.mrb[0].mxu0
    %156 = vdwg.mxu0
    %v157 = vtanh.pop %v139
    %v158 = vtanh.pop %v144
    %v159 = vtanh.pop %v149
    %v160 = vtanh.pop %v154
    %162 = vset.pattern.permute.xlu0 0
    %163 = vperm.xlu0 %162, %v31
    %v164 = vpop.permute.xlu0 %163
    %167 = vset.pattern.permute.xlu0 0
    %168 = vperm.xlu0 %167, %v32
    %v169 = vpop.permute.xlu0 %168
    %172 = vset.pattern.permute.xlu0 0
    %173 = vperm.xlu0 %172, %v33
    %v174 = vpop.permute.xlu0 %173
    %177 = vset.pattern.permute.xlu0 0
    %178 = vperm.xlu0 %177, %v34
    %v179 = vpop.permute.xlu0 %178
    %v181 = vmul.f32 %v157, %v164
    %v182 = vmul.f32 %v158, %v169
    %v183 = vmul.f32 %v159, %v174
    %v184 = vmul.f32 %v160, %v179
    %vm185 = vcmask 64512
    %v186 = vsel %vm185, %v181, 0.0
    %v187 = vsel %vm185, %v182, 0.0
    %v188 = vadd.f32 %v186, %v187
    %v189 = vsel %vm185, %v183, 0.0
    %v190 = vadd.f32 %v188, %v189
    %v191 = vsel %vm185, %v184, 0.0
    %v192 = vadd.f32 %v190, %v191
    %v193 = vrot.slane %v192, 4
    %v194 = vadd.f32 %v192, %v193
    %v195 = vrot.slane %v194, 2
    %v196 = vadd.f32 %v194, %v195
    %v197 = vrot.slane %v196, 1
    %v198 = vadd.f32 %v196, %v197
    %v199 = vstv %s35
    %v200 = vadd.f32 %v198, %v199
    %v201 = vtanh.pop %v200
    %vm202 = vcmask 57344
    %203 = vst.msk [vmem:[#allocation3] sm:$0x1] %vm202, %v201
    // Predicated region
    $region22: #{simple_tc_model_dnn_forward.3} parent=1 // pred_check
      _
    $region23: #{simple_tc_model_dnn_forward.3} parent=1 // pred_check_branch
      %205 = sbr.rel (0) target = $region25
    $region24: #{simple_tc_model_dnn_forward.3} parent=1 // pred_region
      %s207 = ssub.s32 16, 16
      %208 = vsyncadd [#allocation4], %s207
      %s210 = sshll.u32 [#allocation3], 4
      %s211 = int_to_ptr.vmem [resolvable:$true] %s210
      %213 = dma.vmem_to_hbm [thread:$0]  %s211, 16, %s5, [#allocation4]
    $region25: #{simple_tc_model_dnn_forward.3} parent=1 // pred_fallthru
      _
    // Predicated region
    $region26: #{simple_tc_model_dnn_forward.3} parent=1 // pred_check
      _
    $region27: #{simple_tc_model_dnn_forward.3} parent=1 // pred_check_branch
      %215 = sbr.rel (0) target = $region29
    $region28: #{simple_tc_model_dnn_forward.3} parent=1 // pred_region
      %216 = dma.done [#allocation4], 16
    $region29: #{simple_tc_model_dnn_forward.3} parent=1 // pred_fallthru
      _
    %217 = vsyncpa [#allocation4], 1

</llo_original>
